<compile_context>
chip_gen: v5e
topology: v5e:2x2
jax: 0.10.0
libtpu: 0.0.40
codegen_flags: <defaults>
</compile_context>

<pallas_src>
import functools

import jax
import jax.numpy as jnp
from jax import lax
from jax.experimental import pallas as pl
from jax.experimental.pallas import tpu as pltpu


# ----------------------------------------------------------------------------
# Kernels
# ----------------------------------------------------------------------------
def _stats_kernel(x_ref, gram_ref, colsum_ref):
    """Accumulate per-part Gram matrix and column sums over the batch axis."""
    i = pl.program_id(1)

    @pl.when(i == 0)
    def _init():
        gram_ref[...] = jnp.zeros_like(gram_ref)
        colsum_ref[...] = jnp.zeros_like(colsum_ref)

    x = x_ref[...]                                   # (tile_n, D), native dtype

    # Gram accumulation on the MXU: contract the batch dim (dim 0) directly
    # (no explicit transpose through the XLU), f32 accumulation.
    # TODO(synk): optional bf16 cast of x here for very large D on v6e/v7x
    # (accuracy tradeoff) once the f32 MXU becomes the binding unit.
    gram_ref[...] += lax.dot_general(
        x, x, dimension_numbers=(((0,), (0,)), ((), ())),
        preferred_element_type=jnp.float32)          # (D, D)

    # Column sums on the MXU as ones(1, tile_n) @ x -- removes the f32 cast
    # and the XLU cross-sublane reduction from the steady-state body.
    ones_row = jnp.ones((1, x.shape[0]), dtype=x.dtype)
    colsum_ref[...] += lax.dot_general(
        ones_row, x, dimension_numbers=(((1,), (0,)), ((), ())),
        preferred_element_type=jnp.float32)          # (1, D)


def _finalize_kernel(gram_ref, colsum_ref, out_ref, *, n_total):
    """Combine per-part stats, zero the diagonal explicitly, emit the loss."""
    n_f = jnp.float32(n_total)
    g = jnp.sum(gram_ref[...], axis=0)               # (D, D)
    s = jnp.sum(colsum_ref[...], axis=0)             # (1, D)

    # Centered correlation matrix: C = G - s^T s / N.
    mean_outer = lax.dot_general(
        s, s, dimension_numbers=(((0,), (0,)), ((), ())),
        preferred_element_type=jnp.float32)          # (D, D)
    c = g - mean_outer / n_f

    # Explicit one-time diagonal mask (avoids the ||C||_F^2 - sum(diag^2)
    # cancellation near convergence).
    row = lax.broadcasted_iota(jnp.int32, c.shape, 0)
    col = lax.broadcasted_iota(jnp.int32, c.shape, 1)
    no_diag = jnp.where(row == col, jnp.float32(0.0), c)

    out_ref[0, 0] = jnp.sqrt(jnp.sum(no_diag * no_diag)) / n_f


# ----------------------------------------------------------------------------
# Tile sizing helpers
# ----------------------------------------------------------------------------
def _round_up(v, m):
    return ((v + m - 1) // m) * m


def _sublane_multiple(dtype):
    """Sublane packing multiple: 8 for 4-byte, 16 for 2-byte, 32 for 1-byte."""
    return max(8, 32 // jnp.dtype(dtype).itemsize)


def _vmem_budget_bytes():
    """Generation-aware scoped-VMEM budget for this kernel."""
    try:
        physical = pltpu.get_tpu_info().vmem_capacity_bytes
    except Exception:
        physical = 64 << 20        # conservative: v7x per-TC physical VMEM
    return min(physical // 2, 32 << 20)


def _choose_tile_n(n, d, dtype, num_parts, *, num_buffers=2,
                   block_bytes_target=4 << 20):
    """Largest batch tile that (a) keeps the input block around the measured
    HBM-roofline plateau (~1-4 MiB) and (b) fits the scoped VMEM budget
    together with the resident (D, D) accumulators."""
    sublane = _sublane_multiple(dtype)
    itemsize = jnp.dtype(dtype).itemsize
    per_row = d * itemsize
    # Resident f32 accumulators (Gram + colsum output blocks, double-buffered)
    # plus slack for Mosaic internal scratch.
    fixed = 2 * (d * d * 4 + d * 4) + (2 << 20)
    budget = _vmem_budget_bytes()
    max_rows_by_vmem = max(sublane, (budget - fixed) // (num_buffers * per_row))
    tile = min(block_bytes_target // per_row, max_rows_by_vmem)
    # No point exceeding one part's share of the (padded) batch.
    tile = min(tile, _round_up(pl.cdiv(n, num_parts), sublane))
    tile = max(sublane, (tile // sublane) * sublane)
    return int(tile)


# ----------------------------------------------------------------------------
# Wrapper
# ----------------------------------------------------------------------------
def correlation_penalty_loss(x, *, tile_n=None, num_parts=2):
    """x: (N, D) descriptor batch.  Returns scalar float32 loss."""
    n, d = x.shape
    dtype = x.dtype
    itemsize = jnp.dtype(dtype).itemsize
    sublane = _sublane_multiple(dtype)

    if tile_n is None:
        tile_n = _choose_tile_n(n, d, dtype, num_parts)
    tile_n = max(sublane, (int(tile_n) // sublane) * sublane)

    grid_n = pl.cdiv(n, num_parts * tile_n)
    n_pad = num_parts * grid_n * tile_n
    if n_pad != n:
        # Zero rows contribute nothing to G or s; the real N is used below.
        x = jnp.pad(x, ((0, n_pad - n), (0, 0)))

    # Explicit scoped-VMEM limit: required on v5e (16 MiB default) once tiles
    # are enlarged; harmless elsewhere.  num_buffers=2 is the BlockSpec
    # double-buffer; sweep pipeline_mode=pl.Buffered(3) on the input spec if a
    # trace shows exposed DMA issue latency (then bump num_buffers here too).
    num_buffers = 2
    vmem_needed = (num_buffers * tile_n * d * itemsize
                   + 2 * (d * d * 4 + d * 4))
    vmem_limit = int(min(max(vmem_needed + (4 << 20), 16 << 20), 48 << 20))

    gram_parts, colsum_parts = pl.pallas_call(
        _stats_kernel,
        out_shape=(
            jax.ShapeDtypeStruct((num_parts, d, d), jnp.float32),   # Gram
            jax.ShapeDtypeStruct((num_parts, 1, d), jnp.float32),   # col sums
        ),
        grid_spec=pltpu.PrefetchScalarGridSpec(
            num_scalar_prefetch=0,
            grid=(num_parts, grid_n),
            in_specs=[
                pl.BlockSpec((tile_n, d), lambda p, i: (p * grid_n + i, 0)),
            ],
            out_specs=[
                pl.BlockSpec((None, d, d), lambda p, i: (p, 0, 0)),
                pl.BlockSpec((None, 1, d), lambda p, i: (p, 0, 0)),
            ],
        ),
        compiler_params=pltpu.CompilerParams(
            dimension_semantics=("parallel", "arbitrary"),
            vmem_limit_bytes=vmem_limit,
        ),
        cost_estimate=pl.CostEstimate(
            flops=2 * n_pad * d * d + 2 * n_pad * d,
            transcendentals=0,
            bytes_accessed=n_pad * d * itemsize + num_parts * (d * d + d) * 4,
        ),
    )(x)

    out = pl.pallas_call(
        functools.partial(_finalize_kernel, n_total=n),
        out_shape=jax.ShapeDtypeStruct((1, 1), jnp.float32),
        grid_spec=pltpu.PrefetchScalarGridSpec(
            num_scalar_prefetch=0,
            grid=(1,),
            in_specs=[
                pl.BlockSpec((num_parts, d, d), lambda i: (0, 0, 0)),
                pl.BlockSpec((num_parts, 1, d), lambda i: (0, 0, 0)),
            ],
            out_specs=pl.BlockSpec(memory_space=pltpu.MemorySpace.SMEM),
        ),
        compiler_params=pltpu.CompilerParams(
            dimension_semantics=("arbitrary",),
        ),
    )(gram_parts, colsum_parts)
    return out[0, 0]


def correlation_penalty_loss_ref(x):
    """Pure-JAX reference mirroring the PyTorch forward (masked diagonal)."""
    x = x.astype(jnp.float32)
    mean1 = jnp.mean(x, axis=0, keepdims=True)
    zeroed = x - mean1
    cor_mat = zeroed.T @ zeroed
    no_diag = cor_mat - jnp.diag(jnp.diag(cor_mat))
    return jnp.sqrt(jnp.sum(no_diag * no_diag)) / x.shape[0]


if __name__ == "__main__":
    key = jax.random.PRNGKey(0)
    # Small HardNet-style descriptor batch.  N=63 is deliberately not a
    # multiple of the tile so the zero-padding path is exercised.
    N, D = 63, 32
    x = jax.random.normal(key, (N, D), dtype=jnp.float32)
    x = x / jnp.linalg.norm(x, axis=1, keepdims=True)

    ref = correlation_penalty_loss_ref(x)

    # Small forced tile -> multi-step accumulation over the reduction axis.
    loss_tiled = correlation_penalty_loss(x, tile_n=16)
    jax.block_until_ready(loss_tiled)
    assert jnp.allclose(loss_tiled, ref, rtol=1e-4, atol=1e-5), (loss_tiled, ref)

    # Default VMEM-budget-derived tile.
    loss_auto = correlation_penalty_loss(x)
    jax.block_until_ready(loss_auto)
    assert jnp.allclose(loss_auto, ref, rtol=1e-4, atol=1e-5), (loss_auto, ref)

    print("KERNEL_OK")
</pallas_src>

<mosaic_0001>
module attributes {stable_mosaic.version = 11 : i64} {
  func.func @_stats_kernel(%arg0: i32, %arg1: i32, %arg2: memref<16x32xf32, #tpu.memory_space<vmem>>, %arg3: memref<1x32x32xf32, #tpu.memory_space<vmem>>, %arg4: memref<1x1x32xf32, #tpu.memory_space<vmem>>) attributes {dimension_semantics = [#tpu.dimension_semantics<parallel>, #tpu.dimension_semantics<arbitrary>], iteration_bounds = array<i64: 2, 2>, scalar_prefetch = 0 : i64, scratch_operands = 0 : i64, tpu.core_type = #tpu.core_type<tc>, window_params = [{transform_indices = @transform_0, window_bounds = array<i64: 16, 32>}, {transform_indices = @transform_1, window_bounds = array<i64: 1, 32, 32>}, {transform_indices = @transform_2, window_bounds = array<i64: 1, 1, 32>}]} {
    %c0_i32 = arith.constant 0 : i32
    %0 = arith.cmpi eq, %arg1, %c0_i32 : i32
    %1 = arith.extui %0 : i1 to i32
    %c0_i32_0 = arith.constant 0 : i32
    %2 = arith.cmpi ne, %1, %c0_i32_0 : i32
    scf.if %2 {
      %cst_16 = arith.constant 0.000000e+00 : f32
      %19 = vector.broadcast %cst_16 : f32 to vector<32x32xf32>
      %c0_17 = arith.constant 0 : index
      %c0_18 = arith.constant 0 : index
      %c0_19 = arith.constant 0 : index
      %20 = vector.load %arg3[%c0_17, %c0_18, %c0_19] : memref<1x32x32xf32, #tpu.memory_space<vmem>>, vector<1x32x32xf32>
      %21 = vector.shape_cast %20 : vector<1x32x32xf32> to vector<32x32xf32>
      %22 = vector.shape_cast %19 : vector<32x32xf32> to vector<1x32x32xf32>
      tpu.vector_store %arg3[%c0_17, %c0_18, %c0_19], %22 {strides = array<i32>} : memref<1x32x32xf32, #tpu.memory_space<vmem>>, vector<1x32x32xf32>,
      %cst_20 = arith.constant 0.000000e+00 : f32
      %23 = vector.broadcast %cst_20 : f32 to vector<1x32xf32>
      %c0_21 = arith.constant 0 : index
      %c0_22 = arith.constant 0 : index
      %c0_23 = arith.constant 0 : index
      %24 = vector.load %arg4[%c0_21, %c0_22, %c0_23] : memref<1x1x32xf32, #tpu.memory_space<vmem>>, vector<1x1x32xf32>
      %25 = vector.shape_cast %24 : vector<1x1x32xf32> to vector<1x32xf32>
      %26 = vector.shape_cast %23 : vector<1x32xf32> to vector<1x1x32xf32>
      tpu.vector_store %arg4[%c0_21, %c0_22, %c0_23], %26 {strides = array<i32>} : memref<1x1x32xf32, #tpu.memory_space<vmem>>, vector<1x1x32xf32>,
    } else {
    }
    %c0 = arith.constant 0 : index
    %c0_1 = arith.constant 0 : index
    %3 = vector.load %arg2[%c0, %c0_1] : memref<16x32xf32, #tpu.memory_space<vmem>>, vector<16x32xf32>
    %c0_2 = arith.constant 0 : index
    %c0_3 = arith.constant 0 : index
    %c0_4 = arith.constant 0 : index
    %4 = vector.load %arg3[%c0_2, %c0_3, %c0_4] : memref<1x32x32xf32, #tpu.memory_space<vmem>>, vector<1x32x32xf32>
    %5 = vector.shape_cast %4 : vector<1x32x32xf32> to vector<32x32xf32>
    %cst = arith.constant dense<0.000000e+00> : vector<32x32xf32>
    %6 = tpu.matmul %3, %3, %cst {dimension_numbers = #tpu.dot_dimension_numbers<[0], [0], [1], [1], [0, 1, 1, 1], [], []>} : vector<16x32xf32>, vector<16x32xf32>, vector<32x32xf32> -> vector<32x32xf32>
    %7 = arith.addf %5, %6 : vector<32x32xf32>
    %c0_5 = arith.constant 0 : index
    %c0_6 = arith.constant 0 : index
    %c0_7 = arith.constant 0 : index
    %8 = vector.load %arg3[%c0_5, %c0_6, %c0_7] : memref<1x32x32xf32, #tpu.memory_space<vmem>>, vector<1x32x32xf32>
    %9 = vector.shape_cast %8 : vector<1x32x32xf32> to vector<32x32xf32>
    %10 = vector.shape_cast %7 : vector<32x32xf32> to vector<1x32x32xf32>
    tpu.vector_store %arg3[%c0_5, %c0_6, %c0_7], %10 {strides = array<i32>} : memref<1x32x32xf32, #tpu.memory_space<vmem>>, vector<1x32x32xf32>,
    %cst_8 = arith.constant 1.000000e+00 : f32
    %11 = vector.broadcast %cst_8 : f32 to vector<1x16xf32>
    %c0_9 = arith.constant 0 : index
    %c0_10 = arith.constant 0 : index
    %c0_11 = arith.constant 0 : index
    %12 = vector.load %arg4[%c0_9, %c0_10, %c0_11] : memref<1x1x32xf32, #tpu.memory_space<vmem>>, vector<1x1x32xf32>
    %13 = vector.shape_cast %12 : vector<1x1x32xf32> to vector<1x32xf32>
    %cst_12 = arith.constant dense<0.000000e+00> : vector<1x32xf32>
    %14 = tpu.matmul %11, %3, %cst_12 {dimension_numbers = #tpu.dot_dimension_numbers<[1], [0], [0], [1], [0, 0, 1, 1], [], []>} : vector<1x16xf32>, vector<16x32xf32>, vector<1x32xf32> -> vector<1x32xf32>
    %15 = arith.addf %13, %14 : vector<1x32xf32>
    %c0_13 = arith.constant 0 : index
    %c0_14 = arith.constant 0 : index
    %c0_15 = arith.constant 0 : index
    %16 = vector.load %arg4[%c0_13, %c0_14, %c0_15] : memref<1x1x32xf32, #tpu.memory_space<vmem>>, vector<1x1x32xf32>
    %17 = vector.shape_cast %16 : vector<1x1x32xf32> to vector<1x32xf32>
    %18 = vector.shape_cast %15 : vector<1x32xf32> to vector<1x1x32xf32>
    tpu.vector_store %arg4[%c0_13, %c0_14, %c0_15], %18 {strides = array<i32>} : memref<1x1x32xf32, #tpu.memory_space<vmem>>, vector<1x1x32xf32>,
    return
  }
  func.func @transform_0(%arg0: i32, %arg1: i32) -> (i32, i32) {
    %c2_i32 = arith.constant 2 : i32
    %0 = arith.muli %arg0, %c2_i32 : i32
    %1 = arith.addi %0, %arg1 : i32
    %c0_i32 = arith.constant 0 : i32
    %c0_i32_0 = arith.constant 0 : i32
    return %1, %c0_i32 : i32, i32
  }
  func.func @transform_1(%arg0: i32, %arg1: i32) -> (i32, i32, i32) {
    %c0_i32 = arith.constant 0 : i32
    %c0_i32_0 = arith.constant 0 : i32
    %c0_i32_1 = arith.constant 0 : i32
    return %arg0, %c0_i32, %c0_i32_0 : i32, i32, i32
  }
  func.func @transform_2(%arg0: i32, %arg1: i32) -> (i32, i32, i32) {
    %c0_i32 = arith.constant 0 : i32
    %c0_i32_0 = arith.constant 0 : i32
    %c0_i32_1 = arith.constant 0 : i32
    return %arg0, %c0_i32, %c0_i32_0 : i32, i32, i32
  }
}

</mosaic_0001>

<llo_original>
// kernel: tpu_custom_call.1
$region0: #{tpu_custom_call.1}
  #allocation0 [shape = 'u32[]', space=smem, size = 0x4, offset = 0x4, fixed_abs, tag = 'smem constant byte address 0x4 - core index']
  #allocation1 [shape = 'u32[72,128]{1,0:T(1,128)}', space=vmem, size = 0x9000, scoped, tag = 'internal scratch']
  %s0 = inlined_call_operand.vmem [shape: f32[64,32], index: 0, kind: input, shape index: {}]
  %s1 = inlined_call_operand.hbm [shape: f32[2,32,32], index: 1, kind: output, shape index: {0}]
  %s2 = inlined_call_operand.hbm [shape: f32[2,1,32], index: 2, kind: output, shape index: {1}]
  %3 = xla_tuple %s1, %s2
  %s4 = sld [smem:[#allocation0]]
  $region49: #{tpu_custom_call.1} parent=0
    _
  %s6 = ssub.s32 1, %s4
  %s7 = scalar_select 0, %s6, %s4
  $region1: #{tpu_custom_call.1} parent=0
    #allocation2 [shape = 'u8[32768]{0}', space=vmem, size = 0x8000, scoped, tag = 'output window, operand 0']
    #allocation3 [shape = 's32[2]{0}', space=sflag, size = 0x8, scoped, tag = 'scoped memory for tpu_custom_call.1']
    #allocation4 [shape = 'u8[1024]{0}', space=vmem, size = 0x400, scoped, tag = 'output window, operand 1']
    #allocation5 [shape = 's32[2]{0}', space=sflag, size = 0x8, scoped, tag = 'scoped memory for tpu_custom_call.1']
    %8 = vsyncpa [#allocation3], 0
    %s9 = scalar_lea.sflag [#allocation3], 1
    %10 = vsyncpa %s9, 0
    %11 = vsyncpa [#allocation5], 0
    %s12 = scalar_lea.sflag [#allocation5], 1
    %13 = vsyncpa %s12, 0
    loop: start=0, step=1, limit=6
    $region2: #{tpu_custom_call.1} parent=1 // loop_pre_header
      _
    $region3: #{tpu_custom_call.1} parent=1 // loop_header
      %s15 = sphi 0, %s19
      %p16 = scmp.ge.s32.totalorder %s15, 6
      %s22 = sphi 0, %s34
      %s23 = sphi 0, %s30
      %s24 = sphi 0, %s22
      %s25 = sphi 0, %s23
      %s26 = sphi 0, %s24
      %s27 = sphi 0, %s25
      %s41 = sphi 0, %s43
      %s44 = sphi 0, %s41
      %s45 = sphi 0, %s44
      %s61 = sphi 0, %s45
      %s67 = sphi 0, %s69
      %s70 = sphi 0, %s67
      %s71 = sphi 0, %s70
      %s87 = sphi 0, %s71
      %s93 = sphi 0, %s95
      %s96 = sphi 0, %s93
      %s97 = sphi 0, %s96
      %s113 = sphi 0, %s97
    $region4: #{tpu_custom_call.1} parent=1 // loop_header_branch
      %18 = sbr.rel (%p16) target = $region8
    $region5: #{tpu_custom_call.1} parent=1 // loop_body
      %s20 = ssub.s32 %s15, 1
      %s21 = ssub.s32 %s15, 2
      %s28 = sadd.s32 1, %s23
      %p29 = scmp.ge.s32.totalorder %s28, 2
      %s30 = scalar_select %p29, 0, %s28
      %s31 = sadd.s32 1, %s22
      %s32 = scalar_select %p29, %s31, %s22
      %p33 = scmp.ge.s32.totalorder %s32, 2
      %s34 = scalar_select %p33, 0, %s32
      %s35 = smul.u32 %s22, 2
      %s36 = sadd.s32 %s35, %s23
      %s37 = smul.u32 %s34, 2
      %s38 = sadd.s32 %s37, %s30
      %s39 = ssub.s32 %s36, %s38
      %p40 = scmp.eq.s32.totalorder %s39, 0
      %s42 = sadd.s32 %s41, 1
      %s43 = scalar_select %p40, %s41, %s42
      %p46 = pneg %p40
      %p47 = scmp.eq.s32.totalorder %s15, 3
      %p48 = por %p46, %p47
      %p49 = scmp.ne.s32.totalorder %s41, %s44
      %p50 = scmp.eq.s32.totalorder %s15, 0
      %p51 = por %p49, %p50
      %p52 = scmp.ne.s32.totalorder %s41, %s44
      %p53 = scmp.eq.s32.totalorder %s20, 3
      %p54 = por %p52, %p53
      %p55 = scmp.ne.s32.totalorder %s44, %s45
      %p56 = scmp.eq.s32.totalorder %s20, 0
      %p57 = por %p55, %p56
      %p58 = scmp.ne.s32.totalorder %s44, %s45
      %p59 = scmp.eq.s32.totalorder %s21, 3
      %p60 = por %p58, %p59
      %p62 = scmp.ne.s32.totalorder %s45, %s61
      %p63 = scmp.eq.s32.totalorder %s21, 0
      %p64 = por %p62, %p63
      %s65 = ssub.s32 %s22, %s34
      %p66 = scmp.eq.s32.totalorder %s65, 0
      %s68 = sadd.s32 %s67, 1
      %s69 = scalar_select %p66, %s67, %s68
      %p72 = pneg %p66
      %p73 = scmp.eq.s32.totalorder %s15, 3
      %p74 = por %p72, %p73
      %p75 = scmp.ne.s32.totalorder %s67, %s70
      %p76 = scmp.eq.s32.totalorder %s15, 0
      %p77 = por %p75, %p76
      %p78 = scmp.ne.s32.totalorder %s67, %s70
      %p79 = scmp.eq.s32.totalorder %s20, 3
      %p80 = por %p78, %p79
      %p81 = scmp.ne.s32.totalorder %s70, %s71
      %p82 = scmp.eq.s32.totalorder %s20, 0
      %p83 = por %p81, %p82
      %p84 = scmp.ne.s32.totalorder %s70, %s71
      %p85 = scmp.eq.s32.totalorder %s21, 3
      %p86 = por %p84, %p85
      %p88 = scmp.ne.s32.totalorder %s71, %s87
      %p89 = scmp.eq.s32.totalorder %s21, 0
      %p90 = por %p88, %p89
      %s91 = ssub.s32 %s22, %s34
      %p92 = scmp.eq.s32.totalorder %s91, 0
      %s94 = sadd.s32 %s93, 1
      %s95 = scalar_select %p92, %s93, %s94
      %p98 = pneg %p92
      %p99 = scmp.eq.s32.totalorder %s15, 3
      %p100 = por %p98, %p99
      %p101 = scmp.ne.s32.totalorder %s93, %s96
      %p102 = scmp.eq.s32.totalorder %s15, 0
      %p103 = por %p101, %p102
      %p104 = scmp.ne.s32.totalorder %s93, %s96
      %p105 = scmp.eq.s32.totalorder %s20, 3
      %p106 = por %p104, %p105
      %p107 = scmp.ne.s32.totalorder %s96, %s97
      %p108 = scmp.eq.s32.totalorder %s20, 0
      %p109 = por %p107, %p108
      %p110 = scmp.ne.s32.totalorder %s96, %s97
      %p111 = scmp.eq.s32.totalorder %s21, 3
      %p112 = por %p110, %p111
      %p114 = scmp.ne.s32.totalorder %s97, %s113
      %p115 = scmp.eq.s32.totalorder %s21, 0
      %p116 = por %p114, %p115
      %p117 = scmp.le.s32.totalorder 1, %s15
      %p118 = scmp.lt.s32.totalorder %s15, 5
      %p119 = pnand %p117, %p118
      %p120 = pneg %p119
      // Predicated region
      $region9: #{tpu_custom_call.1} parent=5 // pred_check
        _
      $region10: #{tpu_custom_call.1} parent=5 // pred_check_branch
        %122 = sbr.rel (%p119) target = $region12
      $region11: #{tpu_custom_call.1} parent=5 // pred_region
        %s123 = ssub.s32 %s15, 1
      $region12: #{tpu_custom_call.1} parent=5 // pred_fallthru
        _
      %p124 = scmp.lt.s32.totalorder %s15, 4
      // Predicated region
      $region13: #{tpu_custom_call.1} parent=5 // pred_check
        %p125 = pneg %p124
      $region14: #{tpu_custom_call.1} parent=5 // pred_check_branch
        %127 = sbr.rel (%p125) target = $region16
      $region15: #{tpu_custom_call.1} parent=5 // pred_region
        // Predicated region
        $region17: #{tpu_custom_call.1} parent=15 // pred_check
          %p128 = pneg %p51
        $region18: #{tpu_custom_call.1} parent=15 // pred_check_branch
          %130 = sbr.rel (%p128) target = $region20
        $region19: #{tpu_custom_call.1} parent=15 // pred_region
          %s131 = smul.u32 %s22, 2
          %s132 = sadd.s32 %s131, %s23
          %s133 = smul.u32 2, %s132
          %p134 = scmp.lt.s32.totalorder %s133, 7
          %s135 = scalar_select %p134, %s133, 7
          %s136 = smul.addr %s135, 8
          %s137 = scalar_lea.vmem %s0, %s136
          %s138 = smul.u32 %s22, 2
          %s139 = sadd.s32 %s138, %s23
          %s140 = smul.u32 2, %s139
        $region20: #{tpu_custom_call.1} parent=15 // pred_fallthru
          _
      $region16: #{tpu_custom_call.1} parent=5 // pred_fallthru
        _
      %p141 = scmp.le.s32.totalorder 1, %s15
      %p142 = scmp.lt.s32.totalorder %s15, 5
      %p143 = pnand %p141, %p142
      %p144 = pneg %p143
      // Predicated region
      $region21: #{tpu_custom_call.1} parent=5 // pred_check
        _
      $region22: #{tpu_custom_call.1} parent=5 // pred_check_branch
        %146 = sbr.rel (%p143) target = $region24
      $region23: #{tpu_custom_call.1} parent=5 // pred_region
        %s147 = ssub.s32 %s15, 1
        %s148 = smul.u32 %s24, 2
        %s149 = sadd.s32 %s148, %s25
        %s150 = smul.u32 2, %s149
        %p151 = scmp.lt.s32.totalorder %s150, 7
        %s152 = scalar_select %p151, %s150, 7
        %s153 = smul.addr %s152, 8
        %s154 = scalar_lea.vmem %s0, %s153
        %p155 = pneg %p57
        %p156 = pneg %p54
        %p157 = pneg %p83
        %p158 = pneg %p80
        %s159 = sand.u32 %s70, 1
        %s160 = scalar_lea.sflag [#allocation3], %s159
        %s161 = sand.u32 %s70, 1
        %s162 = smul.addr %s161, 32
        %s163 = scalar_lea.vmem [#allocation2], %s162
        %p164 = pneg %p109
        %p165 = pneg %p106
        %s166 = sand.u32 %s96, 1
        %s167 = scalar_lea.sflag [#allocation5], %s166
        %s168 = sand.u32 %s96, 1
        %s169 = scalar_lea.vmem [#allocation4], %s168
        %s170 = smul.u32 %s24, 2
        %s171 = sadd.s32 %s170, %s25
        %s172 = smul.u32 2, %s171
        %p173 = scmp.lt.s32.totalorder %s172, 7
        %s174 = scalar_select %p173, %s172, 7
        %s175 = smul.addr %s174, 8
        %s176 = scalar_lea.vmem %s0, %s175
        %s177 = smul.u32 %s24, 2
        %s178 = sadd.s32 %s177, %s25
        %s179 = smul.u32 2, %s178
        %p180 = scmp.eq.s32.totalorder %s25, 0
        // Predicated region
        $region25: #{tpu_custom_call.1} parent=23 // pred_check
          %p181 = pneg %p180
        $region26: #{tpu_custom_call.1} parent=23 // pred_check_branch
          %183 = sbr.rel (%p181) target = $region28
        $region27: #{tpu_custom_call.1} parent=23 // pred_region
          %vm184 = vcmask 261120
          %185 = vst.msk [vmem:[%s163] sm:$0xff] %vm184, 0.0
          %186 = vst.msk [vmem:[%s163 + $0x8] sm:$0xff] %vm184, 0.0
          %187 = vst.msk [vmem:[%s163 + $0x10] sm:$0xff] %vm184, 0.0
          %188 = vst.msk [vmem:[%s163 + $0x18] sm:$0xff] %vm184, 0.0
          %vm189 = vcmask 253952
          %190 = vst.msk [vmem:[%s169] sm:$0x1] %vm189, 0.0
        $region28: #{tpu_custom_call.1} parent=23 // pred_fallthru
          _
        %v191 = vld [vmem:[%s176] sm:$0xff]
        %v192 = vld [vmem:[%s176 + $0x8] sm:$0xff]
        %v193 = vld [vmem:[%s163] sm:$0xff]
        %v194 = vld [vmem:[%s163 + $0x8] sm:$0xff]
        %v195 = vld [vmem:[%s163 + $0x10] sm:$0xff]
        %v196 = vld [vmem:[%s163 + $0x18] sm:$0xff]
        %197 = vxpose.xlu0.b32.start [1/16] %v191, 128
        %198 = vxpose.xlu0.b32.cont [2/16] %v192, 128
        %199 = vxpose.xlu0.b32.cont [3/16] 0.0, 128
        %200 = vxpose.xlu0.b32.cont [4/16] 0.0, 128
        %201 = vxpose.xlu0.b32.cont [5/16] 0.0, 128
        %202 = vxpose.xlu0.b32.cont [6/16] 0.0, 128
        %203 = vxpose.xlu0.b32.cont [7/16] 0.0, 128
        %204 = vxpose.xlu0.b32.cont [8/16] 0.0, 128
        %205 = vxpose.xlu0.b32.cont [9/16] 0.0, 128
        %206 = vxpose.xlu0.b32.cont [10/16] 0.0, 128
        %207 = vxpose.xlu0.b32.cont [11/16] 0.0, 128
        %208 = vxpose.xlu0.b32.cont [12/16] 0.0, 128
        %209 = vxpose.xlu0.b32.cont [13/16] 0.0, 128
        %210 = vxpose.xlu0.b32.cont [14/16] 0.0, 128
        %211 = vxpose.xlu0.b32.cont [15/16] 0.0, 128
        %212 = vxpose.xlu0.b32.end [16/16] 0.0, 128
        %v213 = vpop.trf.xlu0
        %v214 = vpop.trf.xlu0
        %v215 = vpop.trf.xlu0
        %v216 = vpop.trf.xlu0
        %v217 = vpop.trf.xlu0
        %v218 = vpop.trf.xlu0
        %v219 = vpop.trf.xlu0
        %v220 = vpop.trf.xlu0
        %v221 = vpop.trf.xlu0
        %v222 = vpop.trf.xlu0
        %v223 = vpop.trf.xlu0
        %v224 = vpop.trf.xlu0
        %v225 = vpop.trf.xlu0
        %v226 = vpop.trf.xlu0
        %v227 = vpop.trf.xlu0
        %v228 = vpop.trf.xlu0
        %vm229 = vcmask 130048
        %v231 = vsel %vm229, %v213, 0
        %v234 = vsel %vm229, %v214, 0
        %v237 = vsel %vm229, %v215, 0
        %v240 = vsel %vm229, %v216, 0
        %242 = vmatpush.msra.mxu0 0.0
        %243 = vmatpush.msra.mxu0 0.0
        %244 = vmatpush.msra.mxu0 0.0
        %245 = vmatpush.msra.mxu0 0.0
        %246 = vmatpush.msra.mxu0 0.0
        %247 = vmatpush.msra.mxu0 0.0
        %248 = vmatpush.msra.mxu0 0.0
        %249 = vmatpush.msra.mxu0 0.0
        %250 = vmatpush.msra.mxu0 0.0
        %251 = vmatpush.msra.mxu0 0.0
        %252 = vmatpush.msra.mxu0 0.0
        %253 = vmatpush.msra.mxu0 0.0
        %254 = vmatpush.msra.mxu0 0.0
        %255 = vmatpush.msra.mxu0 0.0
        %256 = vmatpush.msra.mxu0 %v192
        %257 = vmatpush.msra.mxu0 %v191
        %258 = vmatmul.f32.gmra.mxu0 %v231
        %v259 = vpop.f32.mrf.mxu0
        %v260 = vadd.f32 0.0, %v259
        %261 = vmatmul.f32.gmra.mxu0 %v234
        %v262 = vpop.f32.mrf.mxu0
        %v263 = vadd.f32 0.0, %v262
        %264 = vmatmul.f32.gmra.mxu0 %v237
        %v265 = vpop.f32.mrf.mxu0
        %v266 = vadd.f32 0.0, %v265
        %267 = vmatmul.f32.gmra.mxu0 %v240
        %v268 = vpop.f32.mrf.mxu0
        %v269 = vadd.f32 0.0, %v268
        %270 = vdwg.mxu0
        %v271 = vadd.f32 %v193, %v260
        %v272 = vadd.f32 %v194, %v263
        %v273 = vadd.f32 %v195, %v266
        %v274 = vadd.f32 %v196, %v269
        %vm275 = vcmask 261120
        %276 = vst.msk [vmem:[%s163] sm:$0xff] %vm275, %v271
        %277 = vst.msk [vmem:[%s163 + $0x8] sm:$0xff] %vm275, %v272
        %278 = vst.msk [vmem:[%s163 + $0x10] sm:$0xff] %vm275, %v273
        %279 = vst.msk [vmem:[%s163 + $0x18] sm:$0xff] %vm275, %v274
        %v280 = vld [vmem:[%s169] sm:$0x1]
        %v282 = vsel %vm229, 1.0, 0
        %284 = vmatpush.msra.mxu0 0.0
        %285 = vmatpush.msra.mxu0 0.0
        %286 = vmatpush.msra.mxu0 0.0
        %287 = vmatpush.msra.mxu0 0.0
        %288 = vmatpush.msra.mxu0 0.0
        %289 = vmatpush.msra.mxu0 0.0
        %290 = vmatpush.msra.mxu0 0.0
        %291 = vmatpush.msra.mxu0 0.0
        %292 = vmatpush.msra.mxu0 0.0
        %293 = vmatpush.msra.mxu0 0.0
        %294 = vmatpush.msra.mxu0 0.0
        %295 = vmatpush.msra.mxu0 0.0
        %296 = vmatpush.msra.mxu0 0.0
        %297 = vmatpush.msra.mxu0 0.0
        %298 = vmatpush.msra.mxu0 %v192
        %299 = vmatpush.msra.mxu0 %v191
        %300 = vmatmul.f32.gmra.mxu0 %v282
        %v301 = vpop.f32.mrf.mxu0
        %v302 = vadd.f32 0.0, %v301
        %303 = vdwg.mxu0
        %v304 = vadd.f32 %v280, %v302
        %vm305 = vcmask 253952
        %306 = vst.msk [vmem:[%s169] sm:$0x1] %vm305, %v304
        %s307 = sand.u32 %s70, 1
        %s308 = scalar_lea.sflag [#allocation3], %s307
        %s309 = sand.u32 %s70, 1
        %s310 = smul.addr %s309, 32
        %s311 = scalar_lea.vmem [#allocation2], %s310
        %s312 = sand.u32 %s96, 1
        %s313 = scalar_lea.sflag [#allocation5], %s312
        %s314 = sand.u32 %s96, 1
        %s315 = scalar_lea.vmem [#allocation4], %s314
        // Predicated region
        $region29: #{tpu_custom_call.1} parent=23 // pred_check
          %p316 = pneg %p80
        $region30: #{tpu_custom_call.1} parent=23 // pred_check_branch
          %318 = sbr.rel (%p316) target = $region32
        $region31: #{tpu_custom_call.1} parent=23 // pred_region
          %320 = vsyncadd %s308, 0
          %s321 = smul.addr %s24, 4
          %s322 = smul.addr %s321, 8
          %s323 = scalar_lea.hbm %s1, %s322
          %s324 = sshll.u32 %s311, 4
          %s325 = int_to_ptr.vmem [resolvable:$true] %s324
          %s326 = sshll.u32 %s323, 4
          %s327 = int_to_ptr.hbm [resolvable:$true] %s326
          %332 = dma.vmem_to_hbm [thread:$0]  %s325, 512, %s327, %s308, 128, 128, 8
        $region32: #{tpu_custom_call.1} parent=23 // pred_fallthru
          _
        // Predicated region
        $region33: #{tpu_custom_call.1} parent=23 // pred_check
          %p333 = pneg %p106
        $region34: #{tpu_custom_call.1} parent=23 // pred_check_branch
          %335 = sbr.rel (%p333) target = $region36
        $region35: #{tpu_custom_call.1} parent=23 // pred_region
          %337 = vsyncadd %s313, 0
          %s338 = scalar_lea.hbm %s2, %s24
          %s340 = sshll.u32 %s315, 4
          %s341 = int_to_ptr.vmem [resolvable:$true] %s340
          %s342 = sshll.u32 %s338, 4
          %s343 = int_to_ptr.hbm [resolvable:$true] %s342
          %345 = dma.vmem_to_hbm [thread:$0]  %s341, 16, %s343, %s313
        $region36: #{tpu_custom_call.1} parent=23 // pred_fallthru
          _
      $region24: #{tpu_custom_call.1} parent=5 // pred_fallthru
        _
      %p346 = scmp.le.s32.totalorder 2, %s15
      // Predicated region
      $region37: #{tpu_custom_call.1} parent=5 // pred_check
        %p347 = pneg %p346
      $region38: #{tpu_custom_call.1} parent=5 // pred_check_branch
        %349 = sbr.rel (%p347) target = $region40
      $region39: #{tpu_custom_call.1} parent=5 // pred_region
        %s350 = ssub.s32 %s15, 2
        // Predicated region
        $region41: #{tpu_custom_call.1} parent=39 // pred_check
          %p351 = pneg %p86
        $region42: #{tpu_custom_call.1} parent=39 // pred_check_branch
          %353 = sbr.rel (%p351) target = $region44
        $region43: #{tpu_custom_call.1} parent=39 // pred_region
          %s354 = sand.u32 %s71, 1
          %s355 = scalar_lea.sflag [#allocation3], %s354
          %s356 = sand.u32 %s71, 1
          %s357 = smul.addr %s356, 32
          %s358 = scalar_lea.vmem [#allocation2], %s357
          %360 = dma.done %s355, 512
        $region44: #{tpu_custom_call.1} parent=39 // pred_fallthru
          _
        // Predicated region
        $region45: #{tpu_custom_call.1} parent=39 // pred_check
          %p361 = pneg %p112
        $region46: #{tpu_custom_call.1} parent=39 // pred_check_branch
          %363 = sbr.rel (%p361) target = $region48
        $region47: #{tpu_custom_call.1} parent=39 // pred_region
          %s364 = sand.u32 %s97, 1
          %s365 = scalar_lea.sflag [#allocation5], %s364
          %s366 = sand.u32 %s97, 1
          %s367 = scalar_lea.vmem [#allocation4], %s366
          %369 = dma.done %s365, 16
        $region48: #{tpu_custom_call.1} parent=39 // pred_fallthru
          _
      $region40: #{tpu_custom_call.1} parent=5 // pred_fallthru
        _
    $region6: #{tpu_custom_call.1} parent=1 // loop_footer
      %s19 = sadd.s32 1, %s15
    $region7: #{tpu_custom_call.1} parent=1 // loop_footer_branch
      %14 = sbr.rel target = $region3
    $region8: #{tpu_custom_call.1} parent=1 // loop_exit
      _
    %370 = vsyncpa [#allocation3], 1
    %s371 = scalar_lea.sflag [#allocation3], 1
    %372 = vsyncpa %s371, 1
    %373 = vsyncpa [#allocation5], 1
    %s374 = scalar_lea.sflag [#allocation5], 1
    %375 = vsyncpa %s374, 1

</llo_original>
